<compile_context>
chip_gen: v6e
topology: v6e:2x2x1
jax: 0.10.0
libtpu: 0.0.40
codegen_flags: <defaults>
</compile_context>

<pallas_src>
import jax
import jax.numpy as jnp
from jax import lax
from jax.experimental import pallas as pl
from jax.experimental.pallas import tpu as pltpu


# -----------------------------------------------------------------------------
# Kernel: body conv (channels-first im2col matmul) + ReLU + both heads,
#         full batch in one invocation.
# -----------------------------------------------------------------------------
def brainnet_kernel(x_ref, wc_ref, bc_ref, ws_ref, bs_ref, we_ref, be_ref,
                    pool_ref, seg_ref, emb_ref):
    # x_ref   : (CK, B*HW)   channels-first im2col patches of the padded image
    # wc_ref  : (Cf, CK)     body 3x3-conv weight, transposed, rows=(dy,dx,cin)
    # bc_ref  : (Cf, 1)      body conv bias (column)
    # ws_ref  : (K, Cf)      parcellation 1x1-conv weight, transposed
    # bs_ref  : (K, 1)       parcellation bias (column)
    # we_ref  : (E, Cf)      contrastive projection weight, transposed
    # be_ref  : (E, 1)       contrastive bias (column)
    # pool_ref: (B*HW, B)    per-image mean-pooling matrix (1/HW on image b rows)
    # seg_ref : (B, K, HW)   parcellation logits, channels-first (lane-dense)
    # emb_ref : (E, B)       contrastive embeddings, channels-first
    B, K, HW = seg_ref.shape

    # --- body: 3x3 conv (pad=1) + bias + ReLU as one channels-first MXU matmul
    feat = jnp.dot(wc_ref[...], x_ref[...],
                   preferred_element_type=jnp.float32)              # (Cf, B*HW)
    feat = jnp.maximum(feat + bc_ref[...], 0.0)

    # --- head "parcellation": one 1x1-conv matmul for the whole batch; stores
    # are per-image 256-lane-aligned slices and already NCHW-flattened.
    seg = jnp.dot(ws_ref[...], feat,
                  preferred_element_type=jnp.float32) + bs_ref[...]  # (K, B*HW)
    for b in range(B):                                               # static, small
        seg_ref[b] = seg[:, b * HW:(b + 1) * HW]

    # --- head "contrastive": global average pool folded into a matmul, then one
    # tiny projection for the whole batch.
    pooled = jnp.dot(feat, pool_ref[...],
                     preferred_element_type=jnp.float32)             # (Cf, B)
    emb_ref[...] = jnp.dot(we_ref[...], pooled,
                           preferred_element_type=jnp.float32) + be_ref[...]


# -----------------------------------------------------------------------------
# Wrapper
# -----------------------------------------------------------------------------
@jax.jit
def brainnet_forward(image_nchw, params):
    """image_nchw: (B, Cin, H, W) float32. Returns dict of head outputs."""
    wc, bc, ws, bs, we, be = (params["wc"], params["bc"], params["ws"],
                              params["bs"], params["we"], params["be"])
    B, Cin, H, W = image_nchw.shape
    Cf = wc.shape[-1]
    K = ws.shape[-1]
    E = we.shape[-1]
    HW = H * W
    CK = 9 * Cin

    # Wrapper-side layout plumbing (done once, fused by XLA):
    # channels-first im2col patches (CK, B*HW); row = (dy*3+dx)*Cin + cin,
    # column = b*HW + h*W + w  -> matches wc.reshape(CK, Cf) row order.
    x = image_nchw.astype(jnp.float32)
    x_pad = jnp.pad(x, ((0, 0), (0, 0), (1, 1), (1, 1)))
    taps = [x_pad[:, :, dy:dy + H, dx:dx + W]
            for dy in range(3) for dx in range(3)]                   # 9 x (B,Cin,H,W)
    patches_cf = jnp.transpose(jnp.stack(taps, axis=0),
                               (0, 2, 1, 3, 4)).reshape(CK, B * HW)

    wc_t = jnp.transpose(wc.reshape(CK, Cf)).astype(jnp.float32)     # (Cf, CK)
    bc_c = bc.reshape(Cf, 1).astype(jnp.float32)
    ws_t = jnp.transpose(ws).astype(jnp.float32)                     # (K, Cf)
    bs_c = bs.reshape(K, 1).astype(jnp.float32)
    we_t = jnp.transpose(we).astype(jnp.float32)                     # (E, Cf)
    be_c = be.reshape(E, 1).astype(jnp.float32)

    # Per-image mean-pool matrix: pool[p, b] = 1/HW iff flattened pixel p
    # belongs to image b.  Turns the pooling into a single MXU matmul.
    img_id = jnp.repeat(jnp.arange(B, dtype=jnp.int32), HW)          # (B*HW,)
    pool = (img_id[:, None] == jnp.arange(B, dtype=jnp.int32)[None, :])
    pool = pool.astype(jnp.float32) / float(HW)                      # (B*HW, B)

    # Single grid step: at this size the kernel is overhead-bound, so a batch
    # split over grid steps is pure overhead on v5e/v6e (sequential on one TC)
    # and below the ~0.35 us/step threshold where v7x's 2nd TensorCore pays.
    seg, emb_t = pl.pallas_call(
        brainnet_kernel,
        out_shape=(
            jax.ShapeDtypeStruct((B, K, HW), jnp.float32),   # lane-dense (HW=256)
            jax.ShapeDtypeStruct((E, B), jnp.float32),
        ),
        grid_spec=pltpu.PrefetchScalarGridSpec(
            num_scalar_prefetch=0,
            grid=(1,),
            in_specs=[
                pl.BlockSpec((CK, B * HW), lambda i: (0, 0)),
                pl.BlockSpec((Cf, CK), lambda i: (0, 0)),
                pl.BlockSpec((Cf, 1), lambda i: (0, 0)),
                pl.BlockSpec((K, Cf), lambda i: (0, 0)),
                pl.BlockSpec((K, 1), lambda i: (0, 0)),
                pl.BlockSpec((E, Cf), lambda i: (0, 0)),
                pl.BlockSpec((E, 1), lambda i: (0, 0)),
                pl.BlockSpec((B * HW, B), lambda i: (0, 0)),
            ],
            out_specs=[
                pl.BlockSpec((B, K, HW), lambda i: (0, 0, 0)),
                pl.BlockSpec((E, B), lambda i: (0, 0)),
            ],
        ),
        compiler_params=pltpu.CompilerParams(
            dimension_semantics=("arbitrary",)),
    )(patches_cf, wc_t, bc_c, ws_t, bs_c, we_t, be_c, pool)

    return {
        "parcellation": seg.reshape(B, K, H, W),   # already channels-first
        "contrastive": jnp.transpose(emb_t),       # (E,B) -> (B,E), tiny
    }


# -----------------------------------------------------------------------------
# Pure-JAX reference (for correctness check)
# -----------------------------------------------------------------------------
def brainnet_reference(image_nchw, params):
    wc, bc, ws, bs, we, be = (params["wc"], params["bc"], params["ws"],
                              params["bs"], params["we"], params["be"])
    x = jnp.transpose(image_nchw, (0, 2, 3, 1)).astype(jnp.float32)
    feat = lax.conv_general_dilated(
        x, wc, window_strides=(1, 1), padding="SAME",
        dimension_numbers=("NHWC", "HWIO", "NHWC")) + bc
    feat = jnp.maximum(feat, 0.0)
    seg = jnp.einsum("bhwc,ck->bhwk", feat, ws) + bs
    emb = jnp.mean(feat, axis=(1, 2)) @ we + be
    return {
        "parcellation": jnp.transpose(seg, (0, 3, 1, 2)),
        "contrastive": emb,
    }


# -----------------------------------------------------------------------------
# Main
# -----------------------------------------------------------------------------
if __name__ == "__main__":
    B, Cin, H, W = 2, 4, 16, 16
    Cf, K, E = 32, 8, 16

    key = jax.random.PRNGKey(0)
    k_img, k_wc, k_bc, k_ws, k_bs, k_we, k_be = jax.random.split(key, 7)

    image = jax.random.normal(k_img, (B, Cin, H, W), jnp.float32)
    params = {
        "wc": 0.1 * jax.random.normal(k_wc, (3, 3, Cin, Cf), jnp.float32),
        "bc": 0.1 * jax.random.normal(k_bc, (Cf,), jnp.float32),
        "ws": 0.1 * jax.random.normal(k_ws, (Cf, K), jnp.float32),
        "bs": 0.1 * jax.random.normal(k_bs, (K,), jnp.float32),
        "we": 0.1 * jax.random.normal(k_we, (Cf, E), jnp.float32),
        "be": 0.1 * jax.random.normal(k_be, (E,), jnp.float32),
    }

    pred = brainnet_forward(image, params)
    jax.block_until_ready(pred)

    pred_ref = brainnet_reference(image, params)

    assert jnp.allclose(pred["parcellation"], pred_ref["parcellation"],
                        atol=1e-4, rtol=1e-4)
    assert jnp.allclose(pred["contrastive"], pred_ref["contrastive"],
                        atol=1e-4, rtol=1e-4)

    # TODO(synk): SurfaceModule heads (mesh-vertex refinement with
    # initial_vertices) are not instantiated; only HeadModule-like and
    # ContrastiveModule-like heads are implemented.  If spatial sizes grow
    # (256x256 slices / 3D volumes), add a "parallel" batch/spatial grid axis
    # (gated on chip generation / per-step work), build im2col in-kernel to cut
    # the 9x HBM read expansion, and size tiles for v7x's 64 MiB VMEM.
    print("KERNEL_OK")
</pallas_src>

<mosaic_0001>
module attributes {stable_mosaic.version = 11 : i64} {
  func.func @brainnet_kernel(%arg0: i32, %arg1: memref<36x512xf32, #tpu.memory_space<vmem>>, %arg2: memref<32x36xf32, #tpu.memory_space<vmem>>, %arg3: memref<32x1xf32, #tpu.memory_space<vmem>>, %arg4: memref<8x32xf32, #tpu.memory_space<vmem>>, %arg5: memref<8x1xf32, #tpu.memory_space<vmem>>, %arg6: memref<16x32xf32, #tpu.memory_space<vmem>>, %arg7: memref<16x1xf32, #tpu.memory_space<vmem>>, %arg8: memref<512x2xf32, #tpu.memory_space<vmem>>, %arg9: memref<2x8x256xf32, #tpu.memory_space<vmem>>, %arg10: memref<16x2xf32, #tpu.memory_space<vmem>>) attributes {dimension_semantics = [#tpu.dimension_semantics<arbitrary>], iteration_bounds = array<i64: 1>, scalar_prefetch = 0 : i64, scratch_operands = 0 : i64, tpu.core_type = #tpu.core_type<tc>, window_params = [{pipeline_mode = #tpu.pipeline_mode<synchronous>, transform_indices = @transform_0, window_bounds = array<i64: 36, 512>}, {pipeline_mode = #tpu.pipeline_mode<synchronous>, transform_indices = @transform_1, window_bounds = array<i64: 32, 36>}, {pipeline_mode = #tpu.pipeline_mode<synchronous>, transform_indices = @transform_2, window_bounds = array<i64: 32, 1>}, {pipeline_mode = #tpu.pipeline_mode<synchronous>, transform_indices = @transform_3, window_bounds = array<i64: 8, 32>}, {pipeline_mode = #tpu.pipeline_mode<synchronous>, transform_indices = @transform_4, window_bounds = array<i64: 8, 1>}, {pipeline_mode = #tpu.pipeline_mode<synchronous>, transform_indices = @transform_5, window_bounds = array<i64: 16, 32>}, {pipeline_mode = #tpu.pipeline_mode<synchronous>, transform_indices = @transform_6, window_bounds = array<i64: 16, 1>}, {pipeline_mode = #tpu.pipeline_mode<synchronous>, transform_indices = @transform_7, window_bounds = array<i64: 512, 2>}, {pipeline_mode = #tpu.pipeline_mode<synchronous>, transform_indices = @transform_8, window_bounds = array<i64: 2, 8, 256>}, {pipeline_mode = #tpu.pipeline_mode<synchronous>, transform_indices = @transform_9, window_bounds = array<i64: 16, 2>}]} {
    %c0 = arith.constant 0 : index
    %c0_0 = arith.constant 0 : index
    %0 = vector.load %arg2[%c0, %c0_0] : memref<32x36xf32, #tpu.memory_space<vmem>>, vector<32x36xf32>
    %c0_1 = arith.constant 0 : index
    %c0_2 = arith.constant 0 : index
    %1 = vector.load %arg1[%c0_1, %c0_2] : memref<36x512xf32, #tpu.memory_space<vmem>>, vector<36x512xf32>
    %cst = arith.constant dense<0.000000e+00> : vector<32x512xf32>
    %2 = tpu.matmul %0, %1, %cst {dimension_numbers = #tpu.dot_dimension_numbers<[1], [0], [0], [1], [0, 0, 1, 1], [], []>} : vector<32x36xf32>, vector<36x512xf32>, vector<32x512xf32> -> vector<32x512xf32>
    %c0_3 = arith.constant 0 : index
    %c0_4 = arith.constant 0 : index
    %3 = vector.load %arg3[%c0_3, %c0_4] : memref<32x1xf32, #tpu.memory_space<vmem>>, vector<32x1xf32>
    %4 = vector.broadcast %3 : vector<32x1xf32> to vector<32x512xf32>
    %5 = arith.addf %2, %4 : vector<32x512xf32>
    %cst_5 = arith.constant 0.000000e+00 : f32
    %6 = vector.broadcast %cst_5 : f32 to vector<32x512xf32>
    %7 = arith.maximumf %5, %6 : vector<32x512xf32>
    %c0_6 = arith.constant 0 : index
    %c0_7 = arith.constant 0 : index
    %8 = vector.load %arg4[%c0_6, %c0_7] : memref<8x32xf32, #tpu.memory_space<vmem>>, vector<8x32xf32>
    %cst_8 = arith.constant dense<0.000000e+00> : vector<8x512xf32>
    %9 = tpu.matmul %8, %7, %cst_8 {dimension_numbers = #tpu.dot_dimension_numbers<[1], [0], [0], [1], [0, 0, 1, 1], [], []>} : vector<8x32xf32>, vector<32x512xf32>, vector<8x512xf32> -> vector<8x512xf32>
    %c0_9 = arith.constant 0 : index
    %c0_10 = arith.constant 0 : index
    %10 = vector.load %arg5[%c0_9, %c0_10] : memref<8x1xf32, #tpu.memory_space<vmem>>, vector<8x1xf32>
    %11 = vector.broadcast %10 : vector<8x1xf32> to vector<8x512xf32>
    %12 = arith.addf %9, %11 : vector<8x512xf32>
    %13 = vector.extract_strided_slice %12 {offsets = [0, 0], sizes = [8, 256], strides = [1, 1]} : vector<8x512xf32> to vector<8x256xf32>
    %c0_11 = arith.constant 0 : index
    %c0_12 = arith.constant 0 : index
    %c0_13 = arith.constant 0 : index
    %14 = vector.load %arg9[%c0_11, %c0_12, %c0_13] : memref<2x8x256xf32, #tpu.memory_space<vmem>>, vector<1x8x256xf32>
    %15 = vector.shape_cast %14 : vector<1x8x256xf32> to vector<8x256xf32>
    %16 = vector.shape_cast %13 : vector<8x256xf32> to vector<1x8x256xf32>
    tpu.vector_store %arg9[%c0_11, %c0_12, %c0_13], %16 {strides = array<i32>} : memref<2x8x256xf32, #tpu.memory_space<vmem>>, vector<1x8x256xf32>,
    %17 = vector.extract_strided_slice %12 {offsets = [0, 256], sizes = [8, 256], strides = [1, 1]} : vector<8x512xf32> to vector<8x256xf32>
    %c1 = arith.constant 1 : index
    %c0_14 = arith.constant 0 : index
    %c0_15 = arith.constant 0 : index
    %18 = vector.load %arg9[%c1, %c0_14, %c0_15] : memref<2x8x256xf32, #tpu.memory_space<vmem>>, vector<1x8x256xf32>
    %19 = vector.shape_cast %18 : vector<1x8x256xf32> to vector<8x256xf32>
    %20 = vector.shape_cast %17 : vector<8x256xf32> to vector<1x8x256xf32>
    tpu.vector_store %arg9[%c1, %c0_14, %c0_15], %20 {strides = array<i32>} : memref<2x8x256xf32, #tpu.memory_space<vmem>>, vector<1x8x256xf32>,
    %c0_16 = arith.constant 0 : index
    %c0_17 = arith.constant 0 : index
    %21 = vector.load %arg8[%c0_16, %c0_17] : memref<512x2xf32, #tpu.memory_space<vmem>>, vector<512x2xf32>
    %cst_18 = arith.constant dense<0.000000e+00> : vector<32x2xf32>
    %22 = tpu.matmul %7, %21, %cst_18 {dimension_numbers = #tpu.dot_dimension_numbers<[1], [0], [0], [1], [0, 0, 1, 1], [], []>} : vector<32x512xf32>, vector<512x2xf32>, vector<32x2xf32> -> vector<32x2xf32>
    %c0_19 = arith.constant 0 : index
    %c0_20 = arith.constant 0 : index
    %23 = vector.load %arg6[%c0_19, %c0_20] : memref<16x32xf32, #tpu.memory_space<vmem>>, vector<16x32xf32>
    %cst_21 = arith.constant dense<0.000000e+00> : vector<16x2xf32>
    %24 = tpu.matmul %23, %22, %cst_21 {dimension_numbers = #tpu.dot_dimension_numbers<[1], [0], [0], [1], [0, 0, 1, 1], [], []>} : vector<16x32xf32>, vector<32x2xf32>, vector<16x2xf32> -> vector<16x2xf32>
    %c0_22 = arith.constant 0 : index
    %c0_23 = arith.constant 0 : index
    %25 = vector.load %arg7[%c0_22, %c0_23] : memref<16x1xf32, #tpu.memory_space<vmem>>, vector<16x1xf32>
    %26 = vector.broadcast %25 : vector<16x1xf32> to vector<16x2xf32>
    %27 = arith.addf %24, %26 : vector<16x2xf32>
    %c0_24 = arith.constant 0 : index
    %c0_25 = arith.constant 0 : index
    %28 = vector.load %arg10[%c0_24, %c0_25] : memref<16x2xf32, #tpu.memory_space<vmem>>, vector<16x2xf32>
    tpu.vector_store %arg10[%c0_24, %c0_25], %27 {strides = array<i32>} : memref<16x2xf32, #tpu.memory_space<vmem>>, vector<16x2xf32>,
    return
  }
  func.func @transform_0(%arg0: i32) -> (i32, i32) {
    %c0_i32 = arith.constant 0 : i32
    %c0_i32_0 = arith.constant 0 : i32
    %c0_i32_1 = arith.constant 0 : i32
    return %c0_i32, %c0_i32_0 : i32, i32
  }
  func.func @transform_1(%arg0: i32) -> (i32, i32) {
    %c0_i32 = arith.constant 0 : i32
    %c0_i32_0 = arith.constant 0 : i32
    %c0_i32_1 = arith.constant 0 : i32
    return %c0_i32, %c0_i32_0 : i32, i32
  }
  func.func @transform_2(%arg0: i32) -> (i32, i32) {
    %c0_i32 = arith.constant 0 : i32
    %c0_i32_0 = arith.constant 0 : i32
    %c0_i32_1 = arith.constant 0 : i32
    return %c0_i32, %c0_i32_0 : i32, i32
  }
  func.func @transform_3(%arg0: i32) -> (i32, i32) {
    %c0_i32 = arith.constant 0 : i32
    %c0_i32_0 = arith.constant 0 : i32
    %c0_i32_1 = arith.constant 0 : i32
    return %c0_i32, %c0_i32_0 : i32, i32
  }
  func.func @transform_4(%arg0: i32) -> (i32, i32) {
    %c0_i32 = arith.constant 0 : i32
    %c0_i32_0 = arith.constant 0 : i32
    %c0_i32_1 = arith.constant 0 : i32
    return %c0_i32, %c0_i32_0 : i32, i32
  }
  func.func @transform_5(%arg0: i32) -> (i32, i32) {
    %c0_i32 = arith.constant 0 : i32
    %c0_i32_0 = arith.constant 0 : i32
    %c0_i32_1 = arith.constant 0 : i32
    return %c0_i32, %c0_i32_0 : i32, i32
  }
  func.func @transform_6(%arg0: i32) -> (i32, i32) {
    %c0_i32 = arith.constant 0 : i32
    %c0_i32_0 = arith.constant 0 : i32
    %c0_i32_1 = arith.constant 0 : i32
    return %c0_i32, %c0_i32_0 : i32, i32
  }
  func.func @transform_7(%arg0: i32) -> (i32, i32) {
    %c0_i32 = arith.constant 0 : i32
    %c0_i32_0 = arith.constant 0 : i32
    %c0_i32_1 = arith.constant 0 : i32
    return %c0_i32, %c0_i32_0 : i32, i32
  }
  func.func @transform_8(%arg0: i32) -> (i32, i32, i32) {
    %c0_i32 = arith.constant 0 : i32
    %c0_i32_0 = arith.constant 0 : i32
    %c0_i32_1 = arith.constant 0 : i32
    %c0_i32_2 = arith.constant 0 : i32
    return %c0_i32, %c0_i32_0, %c0_i32_1 : i32, i32, i32
  }
  func.func @transform_9(%arg0: i32) -> (i32, i32) {
    %c0_i32 = arith.constant 0 : i32
    %c0_i32_0 = arith.constant 0 : i32
    %c0_i32_1 = arith.constant 0 : i32
    return %c0_i32, %c0_i32_0 : i32, i32
  }
}

</mosaic_0001>

<llo_original>
// kernel: brainnet_forward.1
$region0: #{brainnet_forward.1}
  #allocation0 [shape = 'u32[]', space=smem, size = 0x4, offset = 0x4, fixed_abs, tag = 'smem constant byte address 0x4 - core index']
  #allocation1 [shape = 'u32[144,128]{1,0:T(1,128)}', space=vmem, size = 0x12000, scoped, tag = 'internal scratch']
  %s0 = inlined_call_operand.vmem [shape: f32[36,512], index: 0, kind: input, shape index: {}]
  %s1 = inlined_call_operand.vmem [shape: f32[32,36], index: 1, kind: input, shape index: {}]
  %s2 = inlined_call_operand.vmem [shape: f32[32,1], index: 2, kind: input, shape index: {}]
  %s3 = inlined_call_operand.vmem [shape: f32[8,32], index: 3, kind: input, shape index: {}]
  %s4 = inlined_call_operand.vmem [shape: f32[8,1], index: 4, kind: input, shape index: {}]
  %s5 = inlined_call_operand.vmem [shape: f32[16,32], index: 5, kind: input, shape index: {}]
  %s6 = inlined_call_operand.vmem [shape: f32[16,1], index: 6, kind: input, shape index: {}]
  %s7 = inlined_call_operand.vmem [shape: f32[512,2], index: 7, kind: input, shape index: {}]
  %s8 = inlined_call_operand.vmem [shape: f32[2,8,256], index: 8, kind: output, shape index: {0}]
  %s9 = inlined_call_operand.vmem [shape: f32[16,2], index: 9, kind: output, shape index: {1}]
  %10 = xla_tuple %s8, %s9
  %s11 = sld [smem:[#allocation0]]
  $region50: #{brainnet_forward.1} parent=0
    _
  %s13 = ssub.s32 1, %s11
  %s14 = scalar_select 0, %s13, %s11
  // Predicated region
  $region2: #{brainnet_forward.1} parent=0 // pred_check
    _
  $region3: #{brainnet_forward.1} parent=0 // pred_check_branch
    %16 = sbr.rel (0) target = $region5
  $region4: #{brainnet_forward.1} parent=0 // pred_region
    _
  $region5: #{brainnet_forward.1} parent=0 // pred_fallthru
    _
  // Predicated region
  $region6: #{brainnet_forward.1} parent=0 // pred_check
    _
  $region7: #{brainnet_forward.1} parent=0 // pred_check_branch
    %18 = sbr.rel (0) target = $region9
  $region8: #{brainnet_forward.1} parent=0 // pred_region
    _
  $region9: #{brainnet_forward.1} parent=0 // pred_fallthru
    _
  // Predicated region
  $region10: #{brainnet_forward.1} parent=0 // pred_check
    _
  $region11: #{brainnet_forward.1} parent=0 // pred_check_branch
    %20 = sbr.rel (0) target = $region13
  $region12: #{brainnet_forward.1} parent=0 // pred_region
    _
  $region13: #{brainnet_forward.1} parent=0 // pred_fallthru
    _
  // Predicated region
  $region14: #{brainnet_forward.1} parent=0 // pred_check
    _
  $region15: #{brainnet_forward.1} parent=0 // pred_check_branch
    %22 = sbr.rel (0) target = $region17
  $region16: #{brainnet_forward.1} parent=0 // pred_region
    _
  $region17: #{brainnet_forward.1} parent=0 // pred_fallthru
    _
  // Predicated region
  $region18: #{brainnet_forward.1} parent=0 // pred_check
    _
  $region19: #{brainnet_forward.1} parent=0 // pred_check_branch
    %24 = sbr.rel (0) target = $region21
  $region20: #{brainnet_forward.1} parent=0 // pred_region
    _
  $region21: #{brainnet_forward.1} parent=0 // pred_fallthru
    _
  // Predicated region
  $region22: #{brainnet_forward.1} parent=0 // pred_check
    _
  $region23: #{brainnet_forward.1} parent=0 // pred_check_branch
    %26 = sbr.rel (0) target = $region25
  $region24: #{brainnet_forward.1} parent=0 // pred_region
    _
  $region25: #{brainnet_forward.1} parent=0 // pred_fallthru
    _
  // Predicated region
  $region26: #{brainnet_forward.1} parent=0 // pred_check
    _
  $region27: #{brainnet_forward.1} parent=0 // pred_check_branch
    %28 = sbr.rel (0) target = $region29
  $region28: #{brainnet_forward.1} parent=0 // pred_region
    _
  $region29: #{brainnet_forward.1} parent=0 // pred_fallthru
    _
  // Predicated region
  $region30: #{brainnet_forward.1} parent=0 // pred_check
    _
  $region31: #{brainnet_forward.1} parent=0 // pred_check_branch
    %30 = sbr.rel (0) target = $region33
  $region32: #{brainnet_forward.1} parent=0 // pred_region
    _
  $region33: #{brainnet_forward.1} parent=0 // pred_fallthru
    _
  %v31 = vld [vmem:[%s1] sm:$0xff]
  %v32 = vld [vmem:[%s1 + $0x8] sm:$0xff]
  %v33 = vld [vmem:[%s1 + $0x10] sm:$0xff]
  %v34 = vld [vmem:[%s1 + $0x18] sm:$0xff]
  %v35 = vld [vmem:[%s0] sm:$0xff]
  %v36 = vld [vmem:[%s0 + $0x8] sm:$0xff]
  %v37 = vld [vmem:[%s0 + $0x10] sm:$0xff]
  %v38 = vld [vmem:[%s0 + $0x18] sm:$0xff]
  %v39 = vld [vmem:[%s0 + $0x20] sm:$0xff]
  %v40 = vld [vmem:[%s0 + $0x28] sm:$0xff]
  %v41 = vld [vmem:[%s0 + $0x30] sm:$0xff]
  %v42 = vld [vmem:[%s0 + $0x38] sm:$0xff]
  %v43 = vld [vmem:[%s0 + $0x40] sm:$0xff]
  %v44 = vld [vmem:[%s0 + $0x48] sm:$0xff]
  %v45 = vld [vmem:[%s0 + $0x50] sm:$0xff]
  %v46 = vld [vmem:[%s0 + $0x58] sm:$0xff]
  %v47 = vld [vmem:[%s0 + $0x60] sm:$0xff]
  %v48 = vld [vmem:[%s0 + $0x68] sm:$0xff]
  %v49 = vld [vmem:[%s0 + $0x70] sm:$0xff]
  %v50 = vld [vmem:[%s0 + $0x78] sm:$0xff]
  %v51 = vld [vmem:[%s0 + $0x80] sm:$0xf]
  %v52 = vld [vmem:[%s0 + $0x88] sm:$0xf]
  %v53 = vld [vmem:[%s0 + $0x90] sm:$0xf]
  %v54 = vld [vmem:[%s0 + $0x98] sm:$0xf]
  %v55 = vld [vmem:[%s2] sm:$0xff]
  %v56 = vld [vmem:[%s2 + $0x8] sm:$0xff]
  %v57 = vld [vmem:[%s2 + $0x10] sm:$0xff]
  %v58 = vld [vmem:[%s2 + $0x18] sm:$0xff]
  %60 = vset.pattern.permute.xlu0 0
  %61 = vperm.xlu0 %60, %v55
  %v62 = vpop.permute.xlu0 %61
  %65 = vset.pattern.permute.xlu0 0
  %66 = vperm.xlu0 %65, %v56
  %v67 = vpop.permute.xlu0 %66
  %70 = vset.pattern.permute.xlu0 0
  %71 = vperm.xlu0 %70, %v57
  %v72 = vpop.permute.xlu0 %71
  %75 = vset.pattern.permute.xlu0 0
  %76 = vperm.xlu0 %75, %v58
  %v77 = vpop.permute.xlu0 %76
  %vm79 = vcmask 293888
  %v81 = vsel %vm79, %v31, 0
  %v84 = vsel %vm79, %v32, 0
  %v87 = vsel %vm79, %v33, 0
  %v90 = vsel %vm79, %v34, 0
  %vm92 = vcmask 1043456
  %v94 = vsel %vm92, %v51, 0
  %v97 = vsel %vm92, %v52, 0
  %v100 = vsel %vm92, %v53, 0
  %v103 = vsel %vm92, %v54, 0
  %105 = vmatprep.subr.mxu0 0.0
  %106 = vmatpush1.msra.mxu0 0.0
  %107 = vmatprep.subr.mxu0 0.0
  %108 = vmatpush1.msra.mxu0 0.0
  %109 = vmatprep.subr.mxu0 0.0
  %110 = vmatpush1.msra.mxu0 0.0
  %111 = vmatprep.subr.mxu0 0.0
  %112 = vmatpush1.msra.mxu0 0.0
  %113 = vmatprep.subr.mxu0 0.0
  %114 = vmatpush1.msra.mxu0 0.0
  %115 = vmatprep.subr.mxu0 0.0
  %116 = vmatpush1.msra.mxu0 0.0
  %117 = vmatprep.subr.mxu0 0.0
  %118 = vmatpush1.msra.mxu0 0.0
  %119 = vmatprep.subr.mxu0 0.0
  %120 = vmatpush1.msra.mxu0 0.0
  %121 = vmatprep.subr.mxu0 0.0
  %122 = vmatpush1.msra.mxu0 0.0
  %123 = vmatprep.subr.mxu0 0.0
  %124 = vmatpush1.msra.mxu0 0.0
  %125 = vmatprep.subr.mxu0 0.0
  %126 = vmatpush1.msra.mxu0 0.0
  %127 = vmatprep.subr.mxu0 %v97
  %128 = vmatpush1.msra.mxu0 %v94
  %129 = vmatprep.subr.mxu0 %v48
  %130 = vmatpush1.msra.mxu0 %v47
  %131 = vmatprep.subr.mxu0 %v44
  %132 = vmatpush1.msra.mxu0 %v43
  %133 = vmatprep.subr.mxu0 %v40
  %134 = vmatpush1.msra.mxu0 %v39
  %135 = vmatprep.subr.mxu0 %v36
  %136 = vmatpush1.msra.mxu0 %v35
  %137 = vmatprep.subr.mxu0 0.0
  %138 = vmatpush2.msra.mxu0 0.0
  %139 = vmatprep.subr.mxu0 0.0
  %140 = vmatpush2.msra.mxu0 0.0
  %141 = vmatprep.subr.mxu0 0.0
  %142 = vmatpush2.msra.mxu0 0.0
  %143 = vmatprep.subr.mxu0 0.0
  %144 = vmatpush2.msra.mxu0 0.0
  %145 = vmatprep.subr.mxu0 0.0
  %146 = vmatpush2.msra.mxu0 0.0
  %147 = vmatprep.subr.mxu0 0.0
  %148 = vmatpush2.msra.mxu0 0.0
  %149 = vmatprep.subr.mxu0 0.0
  %150 = vmatpush2.msra.mxu0 0.0
  %151 = vmatprep.subr.mxu0 0.0
  %152 = vmatpush2.msra.mxu0 0.0
  %153 = vmatprep.subr.mxu0 0.0
  %154 = vmatpush2.msra.mxu0 0.0
  %155 = vmatprep.subr.mxu0 0.0
  %156 = vmatpush2.msra.mxu0 0.0
  %157 = vmatprep.subr.mxu0 0.0
  %158 = vmatpush2.msra.mxu0 0.0
  %159 = vmatprep.subr.mxu0 0.0
  %160 = vmatpush2.msra.mxu0 0.0
  %161 = vmatprep.subr.mxu0 0.0
  %162 = vmatpush2.msra.mxu0 0.0
  %163 = vmatprep.subr.mxu0 0.0
  %164 = vmatpush2.msra.mxu0 0.0
  %165 = vmatprep.subr.mxu0 0.0
  %166 = vmatpush2.msra.mxu0 0.0
  %167 = vmatprep.subr.mxu0 0.0
  %168 = vmatpush2.msra.mxu0 0.0
  %169 = vmatprep.mubr.f32.mxu0 0.0
  %170 = vmatmul.mubr.f32.gmra.mxu0 %v81
  %v171 = vpop.f32.mrf.mxu0
  %v172 = vadd.f32 %v62, %v171
  %v173 = vpop.f32.mrf.mxu0
  %v174 = vadd.f32 %v62, %v173
  %175 = vmatprep.mubr.f32.mxu0 0.0
  %176 = vmatmul.mubr.f32.gmra.mxu0 %v84
  %v177 = vpop.f32.mrf.mxu0
  %v178 = vadd.f32 %v67, %v177
  %v179 = vpop.f32.mrf.mxu0
  %v180 = vadd.f32 %v67, %v179
  %181 = vmatprep.mubr.f32.mxu0 0.0
  %182 = vmatmul.mubr.f32.gmra.mxu0 %v87
  %v183 = vpop.f32.mrf.mxu0
  %v184 = vadd.f32 %v72, %v183
  %v185 = vpop.f32.mrf.mxu0
  %v186 = vadd.f32 %v72, %v185
  %187 = vmatprep.mubr.f32.mxu0 0.0
  %188 = vmatmul.mubr.f32.gmra.mxu0 %v90
  %v189 = vpop.f32.mrf.mxu0
  %v190 = vadd.f32 %v77, %v189
  %v191 = vpop.f32.mrf.mxu0
  %v192 = vadd.f32 %v77, %v191
  %193 = vdwg.mxu0
  %194 = vmatprep.subr.mxu0 0.0
  %195 = vmatpush1.msra.mxu0 0.0
  %196 = vmatprep.subr.mxu0 0.0
  %197 = vmatpush1.msra.mxu0 0.0
  %198 = vmatprep.subr.mxu0 0.0
  %199 = vmatpush1.msra.mxu0 0.0
  %200 = vmatprep.subr.mxu0 0.0
  %201 = vmatpush1.msra.mxu0 0.0
  %202 = vmatprep.subr.mxu0 0.0
  %203 = vmatpush1.msra.mxu0 0.0
  %204 = vmatprep.subr.mxu0 0.0
  %205 = vmatpush1.msra.mxu0 0.0
  %206 = vmatprep.subr.mxu0 0.0
  %207 = vmatpush1.msra.mxu0 0.0
  %208 = vmatprep.subr.mxu0 0.0
  %209 = vmatpush1.msra.mxu0 0.0
  %210 = vmatprep.subr.mxu0 0.0
  %211 = vmatpush1.msra.mxu0 0.0
  %212 = vmatprep.subr.mxu0 0.0
  %213 = vmatpush1.msra.mxu0 0.0
  %214 = vmatprep.subr.mxu0 0.0
  %215 = vmatpush1.msra.mxu0 0.0
  %216 = vmatprep.subr.mxu0 %v103
  %217 = vmatpush1.msra.mxu0 %v100
  %218 = vmatprep.subr.mxu0 %v50
  %219 = vmatpush1.msra.mxu0 %v49
  %220 = vmatprep.subr.mxu0 %v46
  %221 = vmatpush1.msra.mxu0 %v45
  %222 = vmatprep.subr.mxu0 %v42
  %223 = vmatpush1.msra.mxu0 %v41
  %224 = vmatprep.subr.mxu0 %v38
  %225 = vmatpush1.msra.mxu0 %v37
  %226 = vmatprep.subr.mxu0 0.0
  %227 = vmatpush2.msra.mxu0 0.0
  %228 = vmatprep.subr.mxu0 0.0
  %229 = vmatpush2.msra.mxu0 0.0
  %230 = vmatprep.subr.mxu0 0.0
  %231 = vmatpush2.msra.mxu0 0.0
  %232 = vmatprep.subr.mxu0 0.0
  %233 = vmatpush2.msra.mxu0 0.0
  %234 = vmatprep.subr.mxu0 0.0
  %235 = vmatpush2.msra.mxu0 0.0
  %236 = vmatprep.subr.mxu0 0.0
  %237 = vmatpush2.msra.mxu0 0.0
  %238 = vmatprep.subr.mxu0 0.0
  %239 = vmatpush2.msra.mxu0 0.0
  %240 = vmatprep.subr.mxu0 0.0
  %241 = vmatpush2.msra.mxu0 0.0
  %242 = vmatprep.subr.mxu0 0.0
  %243 = vmatpush2.msra.mxu0 0.0
  %244 = vmatprep.subr.mxu0 0.0
  %245 = vmatpush2.msra.mxu0 0.0
  %246 = vmatprep.subr.mxu0 0.0
  %247 = vmatpush2.msra.mxu0 0.0
  %248 = vmatprep.subr.mxu0 0.0
  %249 = vmatpush2.msra.mxu0 0.0
  %250 = vmatprep.subr.mxu0 0.0
  %251 = vmatpush2.msra.mxu0 0.0
  %252 = vmatprep.subr.mxu0 0.0
  %253 = vmatpush2.msra.mxu0 0.0
  %254 = vmatprep.subr.mxu0 0.0
  %255 = vmatpush2.msra.mxu0 0.0
  %256 = vmatprep.subr.mxu0 0.0
  %257 = vmatpush2.msra.mxu0 0.0
  %258 = vmatprep.mubr.f32.mxu0 0.0
  %259 = vmatmul.mubr.f32.gmra.mxu0 %v81
  %v260 = vpop.f32.mrf.mxu0
  %v261 = vadd.f32 %v62, %v260
  %v262 = vpop.f32.mrf.mxu0
  %v263 = vadd.f32 %v62, %v262
  %264 = vmatprep.mubr.f32.mxu0 0.0
  %265 = vmatmul.mubr.f32.gmra.mxu0 %v84
  %v266 = vpop.f32.mrf.mxu0
  %v267 = vadd.f32 %v67, %v266
  %v268 = vpop.f32.mrf.mxu0
  %v269 = vadd.f32 %v67, %v268
  %270 = vmatprep.mubr.f32.mxu0 0.0
  %271 = vmatmul.mubr.f32.gmra.mxu0 %v87
  %v272 = vpop.f32.mrf.mxu0
  %v273 = vadd.f32 %v72, %v272
  %v274 = vpop.f32.mrf.mxu0
  %v275 = vadd.f32 %v72, %v274
  %276 = vmatprep.mubr.f32.mxu0 0.0
  %277 = vmatmul.mubr.f32.gmra.mxu0 %v90
  %v278 = vpop.f32.mrf.mxu0
  %v279 = vadd.f32 %v77, %v278
  %v280 = vpop.f32.mrf.mxu0
  %v281 = vadd.f32 %v77, %v280
  %282 = vdwg.mxu0
  %v283 = vmax.f32 %v172, 0.0
  %v284 = vmax.f32 %v174, 0.0
  %v285 = vmax.f32 %v261, 0.0
  %v286 = vmax.f32 %v263, 0.0
  %v287 = vmax.f32 %v178, 0.0
  %v288 = vmax.f32 %v180, 0.0
  %v289 = vmax.f32 %v267, 0.0
  %v290 = vmax.f32 %v269, 0.0
  %v291 = vmax.f32 %v184, 0.0
  %v292 = vmax.f32 %v186, 0.0
  %v293 = vmax.f32 %v273, 0.0
  %v294 = vmax.f32 %v275, 0.0
  %v295 = vmax.f32 %v190, 0.0
  %v296 = vmax.f32 %v192, 0.0
  %v297 = vmax.f32 %v279, 0.0
  %v298 = vmax.f32 %v281, 0.0
  %v299 = vld [vmem:[%s3] sm:$0xff]
  %v300 = vld [vmem:[%s4] sm:$0xff]
  %302 = vset.pattern.permute.xlu0 0
  %303 = vperm.xlu0 %302, %v300
  %v304 = vpop.permute.xlu0 %303
  %vm306 = vcmask 261120
  %v308 = vsel %vm306, %v299, 0
  %310 = vmatprep.subr.mxu0 0.0
  %311 = vmatpush1.msra.mxu0 0.0
  %312 = vmatprep.subr.mxu0 0.0
  %313 = vmatpush1.msra.mxu0 0.0
  %314 = vmatprep.subr.mxu0 0.0
  %315 = vmatpush1.msra.mxu0 0.0
  %316 = vmatprep.subr.mxu0 0.0
  %317 = vmatpush1.msra.mxu0 0.0
  %318 = vmatprep.subr.mxu0 0.0
  %319 = vmatpush1.msra.mxu0 0.0
  %320 = vmatprep.subr.mxu0 0.0
  %321 = vmatpush1.msra.mxu0 0.0
  %322 = vmatprep.subr.mxu0 0.0
  %323 = vmatpush1.msra.mxu0 0.0
  %324 = vmatprep.subr.mxu0 0.0
  %325 = vmatpush1.msra.mxu0 0.0
  %326 = vmatprep.subr.mxu0 0.0
  %327 = vmatpush1.msra.mxu0 0.0
  %328 = vmatprep.subr.mxu0 0.0
  %329 = vmatpush1.msra.mxu0 0.0
  %330 = vmatprep.subr.mxu0 0.0
  %331 = vmatpush1.msra.mxu0 0.0
  %332 = vmatprep.subr.mxu0 0.0
  %333 = vmatpush1.msra.mxu0 0.0
  %334 = vmatprep.subr.mxu0 %v296
  %335 = vmatpush1.msra.mxu0 %v295
  %336 = vmatprep.subr.mxu0 %v292
  %337 = vmatpush1.msra.mxu0 %v291
  %338 = vmatprep.subr.mxu0 %v288
  %339 = vmatpush1.msra.mxu0 %v287
  %340 = vmatprep.subr.mxu0 %v284
  %341 = vmatpush1.msra.mxu0 %v283
  %342 = vmatprep.subr.mxu0 0.0
  %343 = vmatpush2.msra.mxu0 0.0
  %344 = vmatprep.subr.mxu0 0.0
  %345 = vmatpush2.msra.mxu0 0.0
  %346 = vmatprep.subr.mxu0 0.0
  %347 = vmatpush2.msra.mxu0 0.0
  %348 = vmatprep.subr.mxu0 0.0
  %349 = vmatpush2.msra.mxu0 0.0
  %350 = vmatprep.subr.mxu0 0.0
  %351 = vmatpush2.msra.mxu0 0.0
  %352 = vmatprep.subr.mxu0 0.0
  %353 = vmatpush2.msra.mxu0 0.0
  %354 = vmatprep.subr.mxu0 0.0
  %355 = vmatpush2.msra.mxu0 0.0
  %356 = vmatprep.subr.mxu0 0.0
  %357 = vmatpush2.msra.mxu0 0.0
  %358 = vmatprep.subr.mxu0 0.0
  %359 = vmatpush2.msra.mxu0 0.0
  %360 = vmatprep.subr.mxu0 0.0
  %361 = vmatpush2.msra.mxu0 0.0
  %362 = vmatprep.subr.mxu0 0.0
  %363 = vmatpush2.msra.mxu0 0.0
  %364 = vmatprep.subr.mxu0 0.0
  %365 = vmatpush2.msra.mxu0 0.0
  %366 = vmatprep.subr.mxu0 0.0
  %367 = vmatpush2.msra.mxu0 0.0
  %368 = vmatprep.subr.mxu0 0.0
  %369 = vmatpush2.msra.mxu0 0.0
  %370 = vmatprep.subr.mxu0 0.0
  %371 = vmatpush2.msra.mxu0 0.0
  %372 = vmatprep.subr.mxu0 0.0
  %373 = vmatpush2.msra.mxu0 0.0
  %374 = vmatprep.mubr.f32.mxu0 0.0
  %375 = vmatmul.mubr.f32.gmra.mxu0 %v308
  %v376 = vpop.f32.mrf.mxu0
  %v377 = vadd.f32 %v304, %v376
  %v378 = vpop.f32.mrf.mxu0
  %v379 = vadd.f32 %v304, %v378
  %380 = vdwg.mxu0
  %381 = vmatprep.subr.mxu0 0.0
  %382 = vmatpush1.msra.mxu0 0.0
  %383 = vmatprep.subr.mxu0 0.0
  %384 = vmatpush1.msra.mxu0 0.0
  %385 = vmatprep.subr.mxu0 0.0
  %386 = vmatpush1.msra.mxu0 0.0
  %387 = vmatprep.subr.mxu0 0.0
  %388 = vmatpush1.msra.mxu0 0.0
  %389 = vmatprep.subr.mxu0 0.0
  %390 = vmatpush1.msra.mxu0 0.0
  %391 = vmatprep.subr.mxu0 0.0
  %392 = vmatpush1.msra.mxu0 0.0
  %393 = vmatprep.subr.mxu0 0.0
  %394 = vmatpush1.msra.mxu0 0.0
  %395 = vmatprep.subr.mxu0 0.0
  %396 = vmatpush1.msra.mxu0 0.0
  %397 = vmatprep.subr.mxu0 0.0
  %398 = vmatpush1.msra.mxu0 0.0
  %399 = vmatprep.subr.mxu0 0.0
  %400 = vmatpush1.msra.mxu0 0.0
  %401 = vmatprep.subr.mxu0 0.0
  %402 = vmatpush1.msra.mxu0 0.0
  %403 = vmatprep.subr.mxu0 0.0
  %404 = vmatpush1.msra.mxu0 0.0
  %405 = vmatprep.subr.mxu0 %v298
  %406 = vmatpush1.msra.mxu0 %v297
  %407 = vmatprep.subr.mxu0 %v294
  %408 = vmatpush1.msra.mxu0 %v293
  %409 = vmatprep.subr.mxu0 %v290
  %410 = vmatpush1.msra.mxu0 %v289
  %411 = vmatprep.subr.mxu0 %v286
  %412 = vmatpush1.msra.mxu0 %v285
  %413 = vmatprep.subr.mxu0 0.0
  %414 = vmatpush2.msra.mxu0 0.0
  %415 = vmatprep.subr.mxu0 0.0
  %416 = vmatpush2.msra.mxu0 0.0
  %417 = vmatprep.subr.mxu0 0.0
  %418 = vmatpush2.msra.mxu0 0.0
  %419 = vmatprep.subr.mxu0 0.0
  %420 = vmatpush2.msra.mxu0 0.0
  %421 = vmatprep.subr.mxu0 0.0
  %422 = vmatpush2.msra.mxu0 0.0
  %423 = vmatprep.subr.mxu0 0.0
  %424 = vmatpush2.msra.mxu0 0.0
  %425 = vmatprep.subr.mxu0 0.0
  %426 = vmatpush2.msra.mxu0 0.0
  %427 = vmatprep.subr.mxu0 0.0
  %428 = vmatpush2.msra.mxu0 0.0
  %429 = vmatprep.subr.mxu0 0.0
  %430 = vmatpush2.msra.mxu0 0.0
  %431 = vmatprep.subr.mxu0 0.0
  %432 = vmatpush2.msra.mxu0 0.0
  %433 = vmatprep.subr.mxu0 0.0
  %434 = vmatpush2.msra.mxu0 0.0
  %435 = vmatprep.subr.mxu0 0.0
  %436 = vmatpush2.msra.mxu0 0.0
  %437 = vmatprep.subr.mxu0 0.0
  %438 = vmatpush2.msra.mxu0 0.0
  %439 = vmatprep.subr.mxu0 0.0
  %440 = vmatpush2.msra.mxu0 0.0
  %441 = vmatprep.subr.mxu0 0.0
  %442 = vmatpush2.msra.mxu0 0.0
  %443 = vmatprep.subr.mxu0 0.0
  %444 = vmatpush2.msra.mxu0 0.0
  %445 = vmatprep.mubr.f32.mxu0 0.0
  %446 = vmatmul.mubr.f32.gmra.mxu0 %v308
  %v447 = vpop.f32.mrf.mxu0
  %v448 = vadd.f32 %v304, %v447
  %v449 = vpop.f32.mrf.mxu0
  %v450 = vadd.f32 %v304, %v449
  %451 = vdwg.mxu0
  %452 = vst [vmem:[%s8] sm:$0xff] %v377
  %453 = vst [vmem:[%s8 + $0x8] sm:$0xff] %v379
  %s454 = scalar_lea.vmem %s8, 16
  %455 = vst [vmem:[%s454] sm:$0xff] %v448
  %456 = vst [vmem:[%s454 + $0x8] sm:$0xff] %v450
  %v457 = vld [vmem:[%s7] sm:$0xff]
  %v458 = vld [vmem:[%s7 + $0x8] sm:$0xff]
  %v459 = vld [vmem:[%s7 + $0x10] sm:$0xff]
  %v460 = vld [vmem:[%s7 + $0x18] sm:$0xff]
  %v461 = vld [vmem:[%s7 + $0x20] sm:$0xff]
  %v462 = vld [vmem:[%s7 + $0x28] sm:$0xff]
  %v463 = vld [vmem:[%s7 + $0x30] sm:$0xff]
  %v464 = vld [vmem:[%s7 + $0x38] sm:$0xff]
  %v465 = vld [vmem:[%s7 + $0x40] sm:$0xff]
  %v466 = vld [vmem:[%s7 + $0x48] sm:$0xff]
  %v467 = vld [vmem:[%s7 + $0x50] sm:$0xff]
  %v468 = vld [vmem:[%s7 + $0x58] sm:$0xff]
  %v469 = vld [vmem:[%s7 + $0x60] sm:$0xff]
  %v470 = vld [vmem:[%s7 + $0x68] sm:$0xff]
  %v471 = vld [vmem:[%s7 + $0x70] sm:$0xff]
  %v472 = vld [vmem:[%s7 + $0x78] sm:$0xff]
  %v473 = vld [vmem:[%s7 + $0x80] sm:$0xff]
  %v474 = vld [vmem:[%s7 + $0x88] sm:$0xff]
  %v475 = vld [vmem:[%s7 + $0x90] sm:$0xff]
  %v476 = vld [vmem:[%s7 + $0x98] sm:$0xff]
  %v477 = vld [vmem:[%s7 + $0xa0] sm:$0xff]
  %v478 = vld [vmem:[%s7 + $0xa8] sm:$0xff]
  %v479 = vld [vmem:[%s7 + $0xb0] sm:$0xff]
  %v480 = vld [vmem:[%s7 + $0xb8] sm:$0xff]
  %v481 = vld [vmem:[%s7 + $0xc0] sm:$0xff]
  %v482 = vld [vmem:[%s7 + $0xc8] sm:$0xff]
  %v483 = vld [vmem:[%s7 + $0xd0] sm:$0xff]
  %v484 = vld [vmem:[%s7 + $0xd8] sm:$0xff]
  %v485 = vld [vmem:[%s7 + $0xe0] sm:$0xff]
  %v486 = vld [vmem:[%s7 + $0xe8] sm:$0xff]
  %v487 = vld [vmem:[%s7 + $0xf0] sm:$0xff]
  %v488 = vld [vmem:[%s7 + $0xf8] sm:$0xff]
  %v489 = vld [vmem:[%s7 + $0x100] sm:$0xff]
  %v490 = vld [vmem:[%s7 + $0x108] sm:$0xff]
  %v491 = vld [vmem:[%s7 + $0x110] sm:$0xff]
  %v492 = vld [vmem:[%s7 + $0x118] sm:$0xff]
  %v493 = vld [vmem:[%s7 + $0x120] sm:$0xff]
  %v494 = vld [vmem:[%s7 + $0x128] sm:$0xff]
  %v495 = vld [vmem:[%s7 + $0x130] sm:$0xff]
  %v496 = vld [vmem:[%s7 + $0x138] sm:$0xff]
  %v497 = vld [vmem:[%s7 + $0x140] sm:$0xff]
  %v498 = vld [vmem:[%s7 + $0x148] sm:$0xff]
  %v499 = vld [vmem:[%s7 + $0x150] sm:$0xff]
  %v500 = vld [vmem:[%s7 + $0x158] sm:$0xff]
  %v501 = vld [vmem:[%s7 + $0x160] sm:$0xff]
  %v502 = vld [vmem:[%s7 + $0x168] sm:$0xff]
  %v503 = vld [vmem:[%s7 + $0x170] sm:$0xff]
  %v504 = vld [vmem:[%s7 + $0x178] sm:$0xff]
  %v505 = vld [vmem:[%s7 + $0x180] sm:$0xff]
  %v506 = vld [vmem:[%s7 + $0x188] sm:$0xff]
  %v507 = vld [vmem:[%s7 + $0x190] sm:$0xff]
  %v508 = vld [vmem:[%s7 + $0x198] sm:$0xff]
  %v509 = vld [vmem:[%s7 + $0x1a0] sm:$0xff]
  %v510 = vld [vmem:[%s7 + $0x1a8] sm:$0xff]
  %v511 = vld [vmem:[%s7 + $0x1b0] sm:$0xff]
  %v512 = vld [vmem:[%s7 + $0x1b8] sm:$0xff]
  %v513 = vld [vmem:[%s7 + $0x1c0] sm:$0xff]
  %v514 = vld [vmem:[%s7 + $0x1c8] sm:$0xff]
  %v515 = vld [vmem:[%s7 + $0x1d0] sm:$0xff]
  %v516 = vld [vmem:[%s7 + $0x1d8] sm:$0xff]
  %v517 = vld [vmem:[%s7 + $0x1e0] sm:$0xff]
  %v518 = vld [vmem:[%s7 + $0x1e8] sm:$0xff]
  %v519 = vld [vmem:[%s7 + $0x1f0] sm:$0xff]
  %v520 = vld [vmem:[%s7 + $0x1f8] sm:$0xff]
  %521 = vmatprep.subr.mxu0 0.0
  %522 = vmatpush1.msra.mxu0 %v472
  %523 = vmatprep.subr.mxu0 0.0
  %524 = vmatpush1.msra.mxu0 %v471
  %525 = vmatprep.subr.mxu0 0.0
  %526 = vmatpush1.msra.mxu0 %v470
  %527 = vmatprep.subr.mxu0 0.0
  %528 = vmatpush1.msra.mxu0 %v469
  %529 = vmatprep.subr.mxu0 0.0
  %530 = vmatpush1.msra.mxu0 %v468
  %531 = vmatprep.subr.mxu0 0.0
  %532 = vmatpush1.msra.mxu0 %v467
  %533 = vmatprep.subr.mxu0 0.0
  %534 = vmatpush1.msra.mxu0 %v466
  %535 = vmatprep.subr.mxu0 0.0
  %536 = vmatpush1.msra.mxu0 %v465
  %537 = vmatprep.subr.mxu0 0.0
  %538 = vmatpush1.msra.mxu0 %v464
  %539 = vmatprep.subr.mxu0 0.0
  %540 = vmatpush1.msra.mxu0 %v463
  %541 = vmatprep.subr.mxu0 0.0
  %542 = vmatpush1.msra.mxu0 %v462
  %543 = vmatprep.subr.mxu0 0.0
  %544 = vmatpush1.msra.mxu0 %v461
  %545 = vmatprep.subr.mxu0 0.0
  %546 = vmatpush1.msra.mxu0 %v460
  %547 = vmatprep.subr.mxu0 0.0
  %548 = vmatpush1.msra.mxu0 %v459
  %549 = vmatprep.subr.mxu0 0.0
  %550 = vmatpush1.msra.mxu0 %v458
  %551 = vmatprep.subr.mxu0 0.0
  %552 = vmatpush1.msra.mxu0 %v457
  %553 = vmatprep.subr.mxu0 0.0
  %554 = vmatpush2.msra.mxu0 %v488
  %555 = vmatprep.subr.mxu0 0.0
  %556 = vmatpush2.msra.mxu0 %v487
  %557 = vmatprep.subr.mxu0 0.0
  %558 = vmatpush2.msra.mxu0 %v486
  %559 = vmatprep.subr.mxu0 0.0
  %560 = vmatpush2.msra.mxu0 %v485
  %561 = vmatprep.subr.mxu0 0.0
  %562 = vmatpush2.msra.mxu0 %v484
  %563 = vmatprep.subr.mxu0 0.0
  %564 = vmatpush2.msra.mxu0 %v483
  %565 = vmatprep.subr.mxu0 0.0
  %566 = vmatpush2.msra.mxu0 %v482
  %567 = vmatprep.subr.mxu0 0.0
  %568 = vmatpush2.msra.mxu0 %v481
  %569 = vmatprep.subr.mxu0 0.0
  %570 = vmatpush2.msra.mxu0 %v480
  %571 = vmatprep.subr.mxu0 0.0
  %572 = vmatpush2.msra.mxu0 %v479
  %573 = vmatprep.subr.mxu0 0.0
  %574 = vmatpush2.msra.mxu0 %v478
  %575 = vmatprep.subr.mxu0 0.0
  %576 = vmatpush2.msra.mxu0 %v477
  %577 = vmatprep.subr.mxu0 0.0
  %578 = vmatpush2.msra.mxu0 %v476
  %579 = vmatprep.subr.mxu0 0.0
  %580 = vmatpush2.msra.mxu0 %v475
  %581 = vmatprep.subr.mxu0 0.0
  %582 = vmatpush2.msra.mxu0 %v474
  %583 = vmatprep.subr.mxu0 0.0
  %584 = vmatpush2.msra.mxu0 %v473
  %585 = vmatprep.mubr.f32.mxu0 %v284
  %586 = vmatmul.mubr.f32.gmra.mxu0 %v283
  %v587 = vpop.f32.mrf.mxu0
  %v588 = vadd.f32 0.0, %v587
  %v589 = vpop.f32.mrf.mxu0
  %590 = vmatprep.mubr.f32.mxu0 %v288
  %591 = vmatmul.mubr.f32.gmra.mxu0 %v287
  %v592 = vpop.f32.mrf.mxu0
  %v593 = vadd.f32 0.0, %v592
  %v594 = vpop.f32.mrf.mxu0
  %595 = vmatprep.mubr.f32.mxu0 %v292
  %596 = vmatmul.mubr.f32.gmra.mxu0 %v291
  %v597 = vpop.f32.mrf.mxu0
  %v598 = vadd.f32 0.0, %v597
  %v599 = vpop.f32.mrf.mxu0
  %600 = vmatprep.mubr.f32.mxu0 %v296
  %601 = vmatmul.mubr.f32.gmra.mxu0 %v295
  %v602 = vpop.f32.mrf.mxu0
  %v603 = vadd.f32 0.0, %v602
  %v604 = vpop.f32.mrf.mxu0
  %605 = vdwg.mxu0
  %606 = vmatprep.subr.mxu0 0.0
  %607 = vmatpush1.msra.mxu0 %v504
  %608 = vmatprep.subr.mxu0 0.0
  %609 = vmatpush1.msra.mxu0 %v503
  %610 = vmatprep.subr.mxu0 0.0
  %611 = vmatpush1.msra.mxu0 %v502
  %612 = vmatprep.subr.mxu0 0.0
  %613 = vmatpush1.msra.mxu0 %v501
  %614 = vmatprep.subr.mxu0 0.0
  %615 = vmatpush1.msra.mxu0 %v500
  %616 = vmatprep.subr.mxu0 0.0
  %617 = vmatpush1.msra.mxu0 %v499
  %618 = vmatprep.subr.mxu0 0.0
  %619 = vmatpush1.msra.mxu0 %v498
  %620 = vmatprep.subr.mxu0 0.0
  %621 = vmatpush1.msra.mxu0 %v497
  %622 = vmatprep.subr.mxu0 0.0
  %623 = vmatpush1.msra.mxu0 %v496
  %624 = vmatprep.subr.mxu0 0.0
  %625 = vmatpush1.msra.mxu0 %v495
  %626 = vmatprep.subr.mxu0 0.0
  %627 = vmatpush1.msra.mxu0 %v494
  %628 = vmatprep.subr.mxu0 0.0
  %629 = vmatpush1.msra.mxu0 %v493
  %630 = vmatprep.subr.mxu0 0.0
  %631 = vmatpush1.msra.mxu0 %v492
  %632 = vmatprep.subr.mxu0 0.0
  %633 = vmatpush1.msra.mxu0 %v491
  %634 = vmatprep.subr.mxu0 0.0
  %635 = vmatpush1.msra.mxu0 %v490
  %636 = vmatprep.subr.mxu0 0.0
  %637 = vmatpush1.msra.mxu0 %v489
  %638 = vmatprep.subr.mxu0 0.0
  %639 = vmatpush2.msra.mxu0 %v520
  %640 = vmatprep.subr.mxu0 0.0
  %641 = vmatpush2.msra.mxu0 %v519
  %642 = vmatprep.subr.mxu0 0.0
  %643 = vmatpush2.msra.mxu0 %v518
  %644 = vmatprep.subr.mxu0 0.0
  %645 = vmatpush2.msra.mxu0 %v517
  %646 = vmatprep.subr.mxu0 0.0
  %647 = vmatpush2.msra.mxu0 %v516
  %648 = vmatprep.subr.mxu0 0.0
  %649 = vmatpush2.msra.mxu0 %v515
  %650 = vmatprep.subr.mxu0 0.0
  %651 = vmatpush2.msra.mxu0 %v514
  %652 = vmatprep.subr.mxu0 0.0
  %653 = vmatpush2.msra.mxu0 %v513
  %654 = vmatprep.subr.mxu0 0.0
  %655 = vmatpush2.msra.mxu0 %v512
  %656 = vmatprep.subr.mxu0 0.0
  %657 = vmatpush2.msra.mxu0 %v511
  %658 = vmatprep.subr.mxu0 0.0
  %659 = vmatpush2.msra.mxu0 %v510
  %660 = vmatprep.subr.mxu0 0.0
  %661 = vmatpush2.msra.mxu0 %v509
  %662 = vmatprep.subr.mxu0 0.0
  %663 = vmatpush2.msra.mxu0 %v508
  %664 = vmatprep.subr.mxu0 0.0
  %665 = vmatpush2.msra.mxu0 %v507
  %666 = vmatprep.subr.mxu0 0.0
  %667 = vmatpush2.msra.mxu0 %v506
  %668 = vmatprep.subr.mxu0 0.0
  %669 = vmatpush2.msra.mxu0 %v505
  %670 = vmatprep.mubr.f32.mxu0 %v286
  %671 = vmatmul.mubr.f32.gmra.mxu0 %v285
  %v672 = vpop.f32.mrf.mxu0
  %v673 = vadd.f32 %v588, %v672
  %v674 = vpop.f32.mrf.mxu0
  %675 = vmatprep.mubr.f32.mxu0 %v290
  %676 = vmatmul.mubr.f32.gmra.mxu0 %v289
  %v677 = vpop.f32.mrf.mxu0
  %v678 = vadd.f32 %v593, %v677
  %v679 = vpop.f32.mrf.mxu0
  %680 = vmatprep.mubr.f32.mxu0 %v294
  %681 = vmatmul.mubr.f32.gmra.mxu0 %v293
  %v682 = vpop.f32.mrf.mxu0
  %v683 = vadd.f32 %v598, %v682
  %v684 = vpop.f32.mrf.mxu0
  %685 = vmatprep.mubr.f32.mxu0 %v298
  %686 = vmatmul.mubr.f32.gmra.mxu0 %v297
  %v687 = vpop.f32.mrf.mxu0
  %v688 = vadd.f32 %v603, %v687
  %v689 = vpop.f32.mrf.mxu0
  %690 = vdwg.mxu0
  %v691 = vld [vmem:[%s5] sm:$0xff]
  %v692 = vld [vmem:[%s5 + $0x8] sm:$0xff]
  %v693 = vld [vmem:[%s6] sm:$0xff]
  %v694 = vld [vmem:[%s6 + $0x8] sm:$0xff]
  %696 = vset.pattern.permute.xlu0 0
  %697 = vperm.xlu0 %696, %v693
  %v698 = vpop.permute.xlu0 %697
  %701 = vset.pattern.permute.xlu0 0
  %702 = vperm.xlu0 %701, %v694
  %v703 = vpop.permute.xlu0 %702
  %v706 = vsel %vm306, %v691, 0
  %v709 = vsel %vm306, %v692, 0
  %711 = vmatprep.subr.mxu0 0.0
  %712 = vmatpush1.msra.mxu0 0.0
  %713 = vmatprep.subr.mxu0 0.0
  %714 = vmatpush1.msra.mxu0 0.0
  %715 = vmatprep.subr.mxu0 0.0
  %716 = vmatpush1.msra.mxu0 0.0
  %717 = vmatprep.subr.mxu0 0.0
  %718 = vmatpush1.msra.mxu0 0.0
  %719 = vmatprep.subr.mxu0 0.0
  %720 = vmatpush1.msra.mxu0 0.0
  %721 = vmatprep.subr.mxu0 0.0
  %722 = vmatpush1.msra.mxu0 0.0
  %723 = vmatprep.subr.mxu0 0.0
  %724 = vmatpush1.msra.mxu0 0.0
  %725 = vmatprep.subr.mxu0 0.0
  %726 = vmatpush1.msra.mxu0 0.0
  %727 = vmatprep.subr.mxu0 0.0
  %728 = vmatpush1.msra.mxu0 0.0
  %729 = vmatprep.subr.mxu0 0.0
  %730 = vmatpush1.msra.mxu0 0.0
  %731 = vmatprep.subr.mxu0 0.0
  %732 = vmatpush1.msra.mxu0 0.0
  %733 = vmatprep.subr.mxu0 0.0
  %734 = vmatpush1.msra.mxu0 0.0
  %735 = vmatprep.subr.mxu0 0.0
  %736 = vmatpush1.msra.mxu0 %v688
  %737 = vmatprep.subr.mxu0 0.0
  %738 = vmatpush1.msra.mxu0 %v683
  %739 = vmatprep.subr.mxu0 0.0
  %740 = vmatpush1.msra.mxu0 %v678
  %741 = vmatprep.subr.mxu0 0.0
  %742 = vmatpush1.msra.mxu0 %v673
  %743 = vmatprep.subr.mxu0 0.0
  %744 = vmatpush2.msra.mxu0 0.0
  %745 = vmatprep.subr.mxu0 0.0
  %746 = vmatpush2.msra.mxu0 0.0
  %747 = vmatprep.subr.mxu0 0.0
  %748 = vmatpush2.msra.mxu0 0.0
  %749 = vmatprep.subr.mxu0 0.0
  %750 = vmatpush2.msra.mxu0 0.0
  %751 = vmatprep.subr.mxu0 0.0
  %752 = vmatpush2.msra.mxu0 0.0
  %753 = vmatprep.subr.mxu0 0.0
  %754 = vmatpush2.msra.mxu0 0.0
  %755 = vmatprep.subr.mxu0 0.0
  %756 = vmatpush2.msra.mxu0 0.0
  %757 = vmatprep.subr.mxu0 0.0
  %758 = vmatpush2.msra.mxu0 0.0
  %759 = vmatprep.subr.mxu0 0.0
  %760 = vmatpush2.msra.mxu0 0.0
  %761 = vmatprep.subr.mxu0 0.0
  %762 = vmatpush2.msra.mxu0 0.0
  %763 = vmatprep.subr.mxu0 0.0
  %764 = vmatpush2.msra.mxu0 0.0
  %765 = vmatprep.subr.mxu0 0.0
  %766 = vmatpush2.msra.mxu0 0.0
  %767 = vmatprep.subr.mxu0 0.0
  %768 = vmatpush2.msra.mxu0 0.0
  %769 = vmatprep.subr.mxu0 0.0
  %770 = vmatpush2.msra.mxu0 0.0
  %771 = vmatprep.subr.mxu0 0.0
  %772 = vmatpush2.msra.mxu0 0.0
  %773 = vmatprep.subr.mxu0 0.0
  %774 = vmatpush2.msra.mxu0 0.0
  %775 = vmatprep.mubr.f32.mxu0 0.0
  %776 = vmatmul.mubr.f32.gmra.mxu0 %v706
  %v777 = vpop.f32.mrf.mxu0
  %v778 = vadd.f32 %v698, %v777
  %v779 = vpop.f32.mrf.mxu0
  %780 = vmatprep.mubr.f32.mxu0 0.0
  %781 = vmatmul.mubr.f32.gmra.mxu0 %v709
  %v782 = vpop.f32.mrf.mxu0
  %v783 = vadd.f32 %v703, %v782
  %v784 = vpop.f32.mrf.mxu0
  %785 = vdwg.mxu0
  %vm786 = vcmask 15360
  %787 = vst.msk [vmem:[%s9] sm:$0xff] %vm786, %v778
  %788 = vst.msk [vmem:[%s9 + $0x8] sm:$0xff] %vm786, %v783
  // Predicated region
  $region34: #{brainnet_forward.1} parent=0 // pred_check
    _
  $region35: #{brainnet_forward.1} parent=0 // pred_check_branch
    %790 = sbr.rel (0) target = $region37
  $region36: #{brainnet_forward.1} parent=0 // pred_region
    _
  $region37: #{brainnet_forward.1} parent=0 // pred_fallthru
    _
  // Predicated region
  $region38: #{brainnet_forward.1} parent=0 // pred_check
    _
  $region39: #{brainnet_forward.1} parent=0 // pred_check_branch
    %792 = sbr.rel (0) target = $region41
  $region40: #{brainnet_forward.1} parent=0 // pred_region
    _
  $region41: #{brainnet_forward.1} parent=0 // pred_fallthru
    _
  // Predicated region
  $region42: #{brainnet_forward.1} parent=0 // pred_check
    _
  $region43: #{brainnet_forward.1} parent=0 // pred_check_branch
    %794 = sbr.rel (0) target = $region45
  $region44: #{brainnet_forward.1} parent=0 // pred_region
    _
  $region45: #{brainnet_forward.1} parent=0 // pred_fallthru
    _
  // Predicated region
  $region46: #{brainnet_forward.1} parent=0 // pred_check
    _
  $region47: #{brainnet_forward.1} parent=0 // pred_check_branch
    %796 = sbr.rel (0) target = $region49
  $region48: #{brainnet_forward.1} parent=0 // pred_region
    _
  $region49: #{brainnet_forward.1} parent=0 // pred_fallthru
    _

</llo_original>
